<compile_context>
chip_gen: v7x
topology: tpu7x:2x2x1
jax: 0.10.0
libtpu: 0.0.40
codegen_flags: <defaults>
</compile_context>

<pallas_src>
import functools
import math

import jax
import jax.numpy as jnp
from jax import lax
from jax.experimental import pallas as pl
from jax.experimental.pallas import tpu as pltpu


def _round_up(x, m):
    return ((x + m - 1) // m) * m


def _pick_tile(dim, preferred, align):
    """Largest multiple of `align` <= preferred that divides dim, else the full dim."""
    if dim <= preferred:
        return dim
    t = (preferred // align) * align
    while t >= align:
        if dim % t == 0:
            return t
        t -= align
    return dim


# ------------- Kernel 1: xw_scaled = deg^-1/2[src] * (x @ W^T), bf16 output ----------

def _xw_kernel(x_ref, wt_ref, dis_ref, o_ref):
    # bf16 MXU operands, f32 accumulation; src-degree scaling fused into the epilogue.
    xw = jnp.dot(x_ref[...].astype(jnp.bfloat16),
                 wt_ref[...].astype(jnp.bfloat16),
                 preferred_element_type=jnp.float32)
    o_ref[...] = (xw * dis_ref[...]).astype(o_ref.dtype)


def _xw_scaled(x, wt, dis_col):
    M, K = x.shape
    _, F = wt.shape
    tm = _pick_tile(M, 256, 128)
    tn = _pick_tile(F, 512, 128)
    grid = (M // tm, F // tn)
    # K (in_features) is kept as a single full block: typical GCN feature dims fit
    # VMEM easily, so no reduction grid axis / scratch accumulator is needed.
    return pl.pallas_call(
        _xw_kernel,
        out_shape=jax.ShapeDtypeStruct((M, F), jnp.bfloat16),
        grid_spec=pltpu.PrefetchScalarGridSpec(
            num_scalar_prefetch=0,
            grid=grid,
            in_specs=[pl.BlockSpec((tm, K), lambda i, j: (i, 0)),   # x   [node, k]
                      pl.BlockSpec((K, tn), lambda i, j: (0, j)),   # W^T [k, feat]
                      pl.BlockSpec((tm, 1), lambda i, j: (i, 0))],  # deg^-1/2 [node]
            out_specs=pl.BlockSpec((tm, tn), lambda i, j: (i, j))),
        compiler_params=pltpu.CompilerParams(
            dimension_semantics=("parallel", "parallel"),
            vmem_limit_bytes=32 * 1024 * 1024),
    )(x, wt, dis_col)


# ---- Kernel 2: out = act(deg^-1/2[tgt] * (A_nodiag^T @ xw_s + xw_s[tgt]) + bias) ----

def _gcn_agg_kernel(adj_t_ref, xw_ref, xw_diag_ref, dis_tgt_ref, b_ref,
                    o_ref, acc_ref, *, act):
    k = pl.program_id(2)

    @pl.when(k == 0)
    def _():
        acc_ref[...] = jnp.zeros_like(acc_ref)

    # 0/1 edge mask (diagonal already removed in the wrapper) -> bf16 MXU LHS.
    a = adj_t_ref[...].astype(jnp.float32).astype(jnp.bfloat16)
    acc_ref[...] += jnp.dot(a, xw_ref[...], preferred_element_type=jnp.float32)

    @pl.when(k == pl.num_programs(2) - 1)
    def _():
        # Remaining self-loops: A_hat diag == 1 for every node, so add the target
        # tile's own (already src-scaled) features once, then apply the target-side
        # degree scaling, bias and activation.
        out = acc_ref[...] + xw_diag_ref[...].astype(jnp.float32)
        out = out * dis_tgt_ref[...]
        out = out + b_ref[...]
        if act == "relu":
            out = jnp.maximum(out, 0.0)
        o_ref[...] = out.astype(o_ref.dtype)


def _gcn_aggregate(adj_t_i8, xw_scaled, dis_col, bias_row, out_dtype, *, act):
    Np = adj_t_i8.shape[0]
    Fp = xw_scaled.shape[1]
    tm = _pick_tile(Np, 512, 128)   # target-node tile
    tk = _pick_tile(Np, 512, 128)   # source-node (reduction) tile
    tn = _pick_tile(Fp, 512, 128)   # feature tile (prefer full F so adj is read once)
    grid = (Np // tm, Fp // tn, Np // tk)

    return pl.pallas_call(
        functools.partial(_gcn_agg_kernel, act=act),
        out_shape=jax.ShapeDtypeStruct((Np, Fp), out_dtype),
        grid_spec=pltpu.PrefetchScalarGridSpec(
            num_scalar_prefetch=0,
            grid=grid,
            in_specs=[
                pl.BlockSpec((tm, tk), lambda i, j, k: (i, k)),   # A^T [tgt, src] int8
                pl.BlockSpec((tk, tn), lambda i, j, k: (k, j)),   # xw_scaled [src, f]
                pl.BlockSpec((tm, tn), lambda i, j, k: (i, j)),   # xw_scaled [tgt, f]
                pl.BlockSpec((tm, 1), lambda i, j, k: (i, 0)),    # deg^-1/2 [tgt]
                pl.BlockSpec((1, tn), lambda i, j, k: (0, j)),    # bias
            ],
            out_specs=pl.BlockSpec((tm, tn), lambda i, j, k: (i, j)),
            scratch_shapes=[pltpu.VMEM((tm, tn), jnp.float32)]),
        compiler_params=pltpu.CompilerParams(
            dimension_semantics=("parallel", "parallel", "arbitrary"),
            vmem_limit_bytes=32 * 1024 * 1024),
    )(adj_t_i8, xw_scaled, xw_scaled, dis_col, bias_row)


def gcn_forward(x, adj, weight, bias=None, *, act="relu"):
    """GraphConvolutionTorch.forward((x, adj)) -> (act(GCNConv(x, edge_index)), adj)."""
    N = adj.shape[0]
    out_features = weight.shape[0]
    out_dtype = x.dtype

    # A_hat = nonzeros of adj (unit weights) + remaining self loops.  Strip the
    # diagonal here so the hot loop is a pure 0/1 matmul; the (always-1) diagonal is
    # re-added in the aggregation epilogue.  Transpose once so the kernel contraction
    # is the canonical [tgt, src] x [src, f] (no per-step XLU transpose).
    eye = jnp.eye(N, dtype=bool)
    adj_t_i8 = ((adj != 0) & ~eye).T.astype(jnp.int8)            # [tgt, src], 1 B/elem

    # gcn_norm degrees: in-degree incl. self loop (1-byte adjacency read).
    deg = adj_t_i8.sum(axis=1, dtype=jnp.int32).astype(jnp.float32) + 1.0
    dis = lax.rsqrt(deg)                                          # deg >= 1, no inf

    if bias is None:
        bias = jnp.zeros((out_features,), dtype=jnp.float32)

    # Pad node / feature dims to lane-aligned multiples; padded nodes have no edges
    # and deg 1, padded features have zero weight/bias, and both are sliced off below.
    Np = max(_round_up(N, 128), 128)
    Fp = max(_round_up(out_features, 128), 128)
    if Np != N:
        pad = Np - N
        adj_t_i8 = jnp.pad(adj_t_i8, ((0, pad), (0, pad)))
        x = jnp.pad(x, ((0, pad), (0, 0)))
        dis = jnp.pad(dis, (0, pad), constant_values=1.0)
    wt = weight.T.astype(jnp.float32)
    bias_f = bias.astype(jnp.float32)
    if Fp != out_features:
        pad = Fp - out_features
        wt = jnp.pad(wt, ((0, 0), (0, pad)))
        bias_f = jnp.pad(bias_f, (0, pad))

    dis_col = dis.reshape(Np, 1)
    bias_row = bias_f.reshape(1, Fp)

    # Kernel 1: xw_scaled = deg^-1/2[src] * (x @ W^T), stored bf16.
    xw_scaled = _xw_scaled(x.astype(jnp.float32), wt, dis_col)

    # Kernel 2: fused normalized aggregation + self loops + bias + activation.
    out = _gcn_aggregate(adj_t_i8, xw_scaled, dis_col, bias_row, out_dtype, act=act)

    if Np != N or Fp != out_features:
        out = out[:N, :out_features]
    # TODO(synk): self.dropout is stored but never applied in the reference forward.
    return out, adj


if __name__ == "__main__":
    # GraphConvolutionTorch(in_features=32, out_features=64, dropout=0, act=ReLU, use_bias=True)
    N, in_features, out_features = 128, 32, 64

    key = jax.random.PRNGKey(0)
    kx, ka, kw, kb = jax.random.split(key, 4)

    x = jax.random.normal(kx, (N, in_features), dtype=jnp.float32)
    # Sparse-ish (directed) adjacency; only its nonzero pattern matters to GCNConv.
    adj = (jax.random.uniform(ka, (N, N)) < 0.08).astype(jnp.float32)

    limit = math.sqrt(6.0 / (in_features + out_features))          # xavier_uniform
    weight = jax.random.uniform(kw, (out_features, in_features),
                                minval=-limit, maxval=limit, dtype=jnp.float32)
    bias = 0.1 * jax.random.normal(kb, (out_features,), dtype=jnp.float32)

    out, adj_out = gcn_forward(x, adj, weight, bias, act="relu")
    out = jax.block_until_ready(out)

    # Pure-JAX f32 reference with PyG GCNConv semantics.
    e = adj != 0
    a_hat = jnp.where(e | jnp.eye(N, dtype=bool), 1.0, 0.0)
    deg = a_hat.sum(axis=0)
    dis_r = lax.rsqrt(deg)
    a_norm = dis_r[:, None] * a_hat * dis_r[None, :]
    xw_ref = jnp.dot(x, weight.T, precision=lax.Precision.HIGHEST)
    ref = jnp.maximum(
        jnp.dot(a_norm.T, xw_ref, precision=lax.Precision.HIGHEST) + bias, 0.0)

    assert out.shape == (N, out_features)
    assert adj_out.shape == adj.shape
    # bf16 MXU operands (f32 accumulation) -> loosened tolerance vs the f32 reference.
    assert jnp.allclose(out, ref, atol=5e-2, rtol=5e-2), \
        float(jnp.max(jnp.abs(out - ref)))

    print("KERNEL_OK")
</pallas_src>

<mosaic_0001>
module attributes {stable_mosaic.version = 11 : i64} {
  func.func @_xw_kernel(%arg0: i32, %arg1: i32, %arg2: memref<128x32xf32, #tpu.memory_space<vmem>>, %arg3: memref<32x128xf32, #tpu.memory_space<vmem>>, %arg4: memref<128x1xf32, #tpu.memory_space<vmem>>, %arg5: memref<128x128xbf16, #tpu.memory_space<vmem>>) attributes {dimension_semantics = [#tpu.dimension_semantics<parallel>, #tpu.dimension_semantics<parallel>], iteration_bounds = array<i64: 1, 1>, scalar_prefetch = 0 : i64, scratch_operands = 0 : i64, tpu.core_type = #tpu.core_type<tc>, window_params = [{transform_indices = @transform_0, window_bounds = array<i64: 128, 32>}, {transform_indices = @transform_1, window_bounds = array<i64: 32, 128>}, {transform_indices = @transform_2, window_bounds = array<i64: 128, 1>}, {transform_indices = @transform_3, window_bounds = array<i64: 128, 128>}]} {
    %c0 = arith.constant 0 : index
    %c0_0 = arith.constant 0 : index
    %0 = vector.load %arg2[%c0, %c0_0] : memref<128x32xf32, #tpu.memory_space<vmem>>, vector<128x32xf32>
    %1 = arith.truncf %0 : vector<128x32xf32> to vector<128x32xbf16>
    %c0_1 = arith.constant 0 : index
    %c0_2 = arith.constant 0 : index
    %2 = vector.load %arg3[%c0_1, %c0_2] : memref<32x128xf32, #tpu.memory_space<vmem>>, vector<32x128xf32>
    %3 = arith.truncf %2 : vector<32x128xf32> to vector<32x128xbf16>
    %cst = arith.constant dense<0.000000e+00> : vector<128x128xf32>
    %4 = tpu.matmul %1, %3, %cst {dimension_numbers = #tpu.dot_dimension_numbers<[1], [0], [0], [1], [0, 0, 1, 1], [], []>} : vector<128x32xbf16>, vector<32x128xbf16>, vector<128x128xf32> -> vector<128x128xf32>
    %c0_3 = arith.constant 0 : index
    %c0_4 = arith.constant 0 : index
    %5 = vector.load %arg4[%c0_3, %c0_4] : memref<128x1xf32, #tpu.memory_space<vmem>>, vector<128x1xf32>
    %6 = vector.broadcast %5 : vector<128x1xf32> to vector<128x128xf32>
    %7 = arith.mulf %4, %6 : vector<128x128xf32>
    %8 = arith.truncf %7 : vector<128x128xf32> to vector<128x128xbf16>
    %c0_5 = arith.constant 0 : index
    %c0_6 = arith.constant 0 : index
    %9 = vector.load %arg5[%c0_5, %c0_6] : memref<128x128xbf16, #tpu.memory_space<vmem>>, vector<128x128xbf16>
    tpu.vector_store %arg5[%c0_5, %c0_6], %8 {strides = array<i32>} : memref<128x128xbf16, #tpu.memory_space<vmem>>, vector<128x128xbf16>,
    return
  }
  func.func @transform_0(%arg0: i32, %arg1: i32) -> (i32, i32) {
    %c0_i32 = arith.constant 0 : i32
    %c0_i32_0 = arith.constant 0 : i32
    return %arg0, %c0_i32 : i32, i32
  }
  func.func @transform_1(%arg0: i32, %arg1: i32) -> (i32, i32) {
    %c0_i32 = arith.constant 0 : i32
    %c0_i32_0 = arith.constant 0 : i32
    return %c0_i32, %arg1 : i32, i32
  }
  func.func @transform_2(%arg0: i32, %arg1: i32) -> (i32, i32) {
    %c0_i32 = arith.constant 0 : i32
    %c0_i32_0 = arith.constant 0 : i32
    return %arg0, %c0_i32 : i32, i32
  }
  func.func @transform_3(%arg0: i32, %arg1: i32) -> (i32, i32) {
    %c0_i32 = arith.constant 0 : i32
    return %arg0, %arg1 : i32, i32
  }
}

</mosaic_0001>

<llo_original>
// kernel: tpu_custom_call.1
$region0: #{tpu_custom_call.1}
  #allocation0 [shape = 'u32[]', space=smem, size = 0x4, offset = 0x4, fixed_abs, tag = 'smem constant byte address 0x4 - core index']
  #allocation1 [shape = 'u32[144,128]{1,0:T(1,128)}', space=vmem, size = 0x12000, scoped, tag = 'internal scratch']
  %s0 = inlined_call_operand.vmem [shape: f32[128,32], index: 0, kind: input, shape index: {}]
  %s1 = inlined_call_operand.vmem [shape: f32[32,128], index: 1, kind: input, shape index: {}]
  %s2 = inlined_call_operand.vmem [shape: f32[128,1], index: 2, kind: input, shape index: {}]
  %s3 = inlined_call_operand.hbm [shape: bf16[128,128], index: 3, kind: output, shape index: {}]
  %s4 = sld [smem:[#allocation0]]
  $region22: #{tpu_custom_call.1} parent=0
    _
  %s6 = ssub.s32 1, %s4
  %s7 = scalar_select 0, %s6, %s4
  $region1: #{tpu_custom_call.1} parent=0
    #allocation2 [shape = 'u8[32768]{0}', space=vmem, size = 0x8000, scoped, tag = 'output window, operand 0, single buffered']
    #allocation3 [shape = 's32[1]{0}', space=sflag, size = 0x4, scoped, tag = 'scoped memory for tpu_custom_call.1']
    %8 = vsyncpa [#allocation3], 0
    // Predicated region
    $region2: #{tpu_custom_call.1} parent=1 // pred_check
      _
    $region3: #{tpu_custom_call.1} parent=1 // pred_check_branch
      %10 = sbr.rel (0) target = $region5
    $region4: #{tpu_custom_call.1} parent=1 // pred_region
      _
    $region5: #{tpu_custom_call.1} parent=1 // pred_fallthru
      _
    // Predicated region
    $region6: #{tpu_custom_call.1} parent=1 // pred_check
      _
    $region7: #{tpu_custom_call.1} parent=1 // pred_check_branch
      %12 = sbr.rel (0) target = $region9
    $region8: #{tpu_custom_call.1} parent=1 // pred_region
      _
    $region9: #{tpu_custom_call.1} parent=1 // pred_fallthru
      _
    // Predicated region
    $region10: #{tpu_custom_call.1} parent=1 // pred_check
      _
    $region11: #{tpu_custom_call.1} parent=1 // pred_check_branch
      %14 = sbr.rel (0) target = $region13
    $region12: #{tpu_custom_call.1} parent=1 // pred_region
      _
    $region13: #{tpu_custom_call.1} parent=1 // pred_fallthru
      _
    %v16 = vld [vmem:[%s0] sm:$0xff]
    %v17 = vld [vmem:[%s0 + $0x8] sm:$0xff]
    %v18 = vld [vmem:[%s0 + $0x10] sm:$0xff]
    %v19 = vld [vmem:[%s0 + $0x18] sm:$0xff]
    %v20 = vld [vmem:[%s0 + $0x20] sm:$0xff]
    %v21 = vld [vmem:[%s0 + $0x28] sm:$0xff]
    %v22 = vld [vmem:[%s0 + $0x30] sm:$0xff]
    %v23 = vld [vmem:[%s0 + $0x38] sm:$0xff]
    %v24 = vld [vmem:[%s0 + $0x40] sm:$0xff]
    %v25 = vld [vmem:[%s0 + $0x48] sm:$0xff]
    %v26 = vld [vmem:[%s0 + $0x50] sm:$0xff]
    %v27 = vld [vmem:[%s0 + $0x58] sm:$0xff]
    %v28 = vld [vmem:[%s0 + $0x60] sm:$0xff]
    %v29 = vld [vmem:[%s0 + $0x68] sm:$0xff]
    %v30 = vld [vmem:[%s0 + $0x70] sm:$0xff]
    %v31 = vld [vmem:[%s0 + $0x78] sm:$0xff]
    %v32 = vpack.c.bf16 %v17, %v16
    %v33 = vpack.c.bf16 %v19, %v18
    %v34 = vpack.c.bf16 %v21, %v20
    %v35 = vpack.c.bf16 %v23, %v22
    %v36 = vpack.c.bf16 %v25, %v24
    %v37 = vpack.c.bf16 %v27, %v26
    %v38 = vpack.c.bf16 %v29, %v28
    %v39 = vpack.c.bf16 %v31, %v30
    %v40 = vld [vmem:[%s1] sm:$0xff]
    %v41 = vld [vmem:[%s1 + $0x8] sm:$0xff]
    %v42 = vld [vmem:[%s1 + $0x10] sm:$0xff]
    %v43 = vld [vmem:[%s1 + $0x18] sm:$0xff]
    %v44 = vpack.c.bf16 %v41, %v40
    %v45 = vpack.c.bf16 %v43, %v42
    %vm46 = vcmask 261120
    %v48 = vsel %vm46, %v32, 0
    %v51 = vsel %vm46, %v33, 0
    %v54 = vsel %vm46, %v34, 0
    %v57 = vsel %vm46, %v35, 0
    %v60 = vsel %vm46, %v36, 0
    %v63 = vsel %vm46, %v37, 0
    %v66 = vsel %vm46, %v38, 0
    %v69 = vsel %vm46, %v39, 0
    %71 = vmatprep.subr.bf16.mxu0 0
    %72 = vmatpush1.bf16.msra.mxu0 %v44
    %73 = vmatprep.subr.bf16.mxu0 0
    %74 = vmatpush1.bf16.msra.mxu0 %v45
    %75 = vmatprep.subr.bf16.mxu0 0
    %76 = vmatpush1.bf16.msra.mxu0 0
    %77 = vmatprep.subr.bf16.mxu0 0
    %78 = vmatpush1.bf16.msra.mxu0 0
    %79 = vmatprep.subr.bf16.mxu0 0
    %80 = vmatpush1.bf16.msra.mxu0 0
    %81 = vmatprep.subr.bf16.mxu0 0
    %82 = vmatpush1.bf16.msra.mxu0 0
    %83 = vmatprep.subr.bf16.mxu0 0
    %84 = vmatpush1.bf16.msra.mxu0 0
    %85 = vmatprep.subr.bf16.mxu0 0
    %86 = vmatpush1.bf16.msra.mxu0 0
    %87 = vmatprep.subr.bf16.mxu0 0
    %88 = vmatpush1.bf16.msra.mxu0 0
    %89 = vmatprep.subr.bf16.mxu0 0
    %90 = vmatpush1.bf16.msra.mxu0 0
    %91 = vmatprep.subr.bf16.mxu0 0
    %92 = vmatpush1.bf16.msra.mxu0 0
    %93 = vmatprep.subr.bf16.mxu0 0
    %94 = vmatpush1.bf16.msra.mxu0 0
    %95 = vmatprep.subr.bf16.mxu0 0
    %96 = vmatpush1.bf16.msra.mxu0 0
    %97 = vmatprep.subr.bf16.mxu0 0
    %98 = vmatpush1.bf16.msra.mxu0 0
    %99 = vmatprep.subr.bf16.mxu0 0
    %100 = vmatpush1.bf16.msra.mxu0 0
    %101 = vmatprep.subr.bf16.mxu0 0
    %102 = vmatpush1.bf16.msra.mxu0 0
    %103 = vmatprep.mubr.bf16.mxu0 0
    %104 = vmatmul.mubr.bf16.gmra.mrb[0].mxu0 %v48
    %v105 = vpop.f32.mrb[0].mxu0
    %v106 = vadd.f32 0.0, %v105
    %v107 = vpop.f32.mrb[0].mxu0
    %v108 = vpop.f32.mrb[0].mxu0
    %v109 = vadd.f32 0.0, %v108
    %v110 = vpop.f32.mrb[0].mxu0
    %111 = vmatprep.mubr.bf16.mxu0 0
    %112 = vmatmul.mubr.bf16.gmra.mrb[0].mxu0 %v51
    %v113 = vpop.f32.mrb[0].mxu0
    %v114 = vadd.f32 0.0, %v113
    %v115 = vpop.f32.mrb[0].mxu0
    %v116 = vpop.f32.mrb[0].mxu0
    %v117 = vadd.f32 0.0, %v116
    %v118 = vpop.f32.mrb[0].mxu0
    %119 = vmatprep.mubr.bf16.mxu0 0
    %120 = vmatmul.mubr.bf16.gmra.mrb[0].mxu0 %v54
    %v121 = vpop.f32.mrb[0].mxu0
    %v122 = vadd.f32 0.0, %v121
    %v123 = vpop.f32.mrb[0].mxu0
    %v124 = vpop.f32.mrb[0].mxu0
    %v125 = vadd.f32 0.0, %v124
    %v126 = vpop.f32.mrb[0].mxu0
    %127 = vmatprep.mubr.bf16.mxu0 0
    %128 = vmatmul.mubr.bf16.gmra.mrb[0].mxu0 %v57
    %v129 = vpop.f32.mrb[0].mxu0
    %v130 = vadd.f32 0.0, %v129
    %v131 = vpop.f32.mrb[0].mxu0
    %v132 = vpop.f32.mrb[0].mxu0
    %v133 = vadd.f32 0.0, %v132
    %v134 = vpop.f32.mrb[0].mxu0
    %135 = vmatprep.mubr.bf16.mxu0 0
    %136 = vmatmul.mubr.bf16.gmra.mrb[0].mxu0 %v60
    %v137 = vpop.f32.mrb[0].mxu0
    %v138 = vadd.f32 0.0, %v137
    %v139 = vpop.f32.mrb[0].mxu0
    %v140 = vpop.f32.mrb[0].mxu0
    %v141 = vadd.f32 0.0, %v140
    %v142 = vpop.f32.mrb[0].mxu0
    %143 = vmatprep.mubr.bf16.mxu0 0
    %144 = vmatmul.mubr.bf16.gmra.mrb[0].mxu0 %v63
    %v145 = vpop.f32.mrb[0].mxu0
    %v146 = vadd.f32 0.0, %v145
    %v147 = vpop.f32.mrb[0].mxu0
    %v148 = vpop.f32.mrb[0].mxu0
    %v149 = vadd.f32 0.0, %v148
    %v150 = vpop.f32.mrb[0].mxu0
    %151 = vmatprep.mubr.bf16.mxu0 0
    %152 = vmatmul.mubr.bf16.gmra.mrb[0].mxu0 %v66
    %v153 = vpop.f32.mrb[0].mxu0
    %v154 = vadd.f32 0.0, %v153
    %v155 = vpop.f32.mrb[0].mxu0
    %v156 = vpop.f32.mrb[0].mxu0
    %v157 = vadd.f32 0.0, %v156
    %v158 = vpop.f32.mrb[0].mxu0
    %159 = vmatprep.mubr.bf16.mxu0 0
    %160 = vmatmul.mubr.bf16.gmra.mrb[0].mxu0 %v69
    %v161 = vpop.f32.mrb[0].mxu0
    %v162 = vadd.f32 0.0, %v161
    %v163 = vpop.f32.mrb[0].mxu0
    %v164 = vpop.f32.mrb[0].mxu0
    %v165 = vadd.f32 0.0, %v164
    %v166 = vpop.f32.mrb[0].mxu0
    %167 = vdwg.mxu0
    %v168 = vld [vmem:[%s2] sm:$0xff]
    %v169 = vld [vmem:[%s2 + $0x8] sm:$0xff]
    %v170 = vld [vmem:[%s2 + $0x10] sm:$0xff]
    %v171 = vld [vmem:[%s2 + $0x18] sm:$0xff]
    %v172 = vld [vmem:[%s2 + $0x20] sm:$0xff]
    %v173 = vld [vmem:[%s2 + $0x28] sm:$0xff]
    %v174 = vld [vmem:[%s2 + $0x30] sm:$0xff]
    %v175 = vld [vmem:[%s2 + $0x38] sm:$0xff]
    %v176 = vld [vmem:[%s2 + $0x40] sm:$0xff]
    %v177 = vld [vmem:[%s2 + $0x48] sm:$0xff]
    %v178 = vld [vmem:[%s2 + $0x50] sm:$0xff]
    %v179 = vld [vmem:[%s2 + $0x58] sm:$0xff]
    %v180 = vld [vmem:[%s2 + $0x60] sm:$0xff]
    %v181 = vld [vmem:[%s2 + $0x68] sm:$0xff]
    %v182 = vld [vmem:[%s2 + $0x70] sm:$0xff]
    %v183 = vld [vmem:[%s2 + $0x78] sm:$0xff]
    %185 = vset.pattern.permute.xlu0 0
    %186 = vperm.xlu0 %185, %v168
    %v187 = vpop.permute.xlu0 %186
    %190 = vset.pattern.permute.xlu0 0
    %191 = vperm.xlu0 %190, %v169
    %v192 = vpop.permute.xlu0 %191
    %195 = vset.pattern.permute.xlu0 0
    %196 = vperm.xlu0 %195, %v170
    %v197 = vpop.permute.xlu0 %196
    %200 = vset.pattern.permute.xlu0 0
    %201 = vperm.xlu0 %200, %v171
    %v202 = vpop.permute.xlu0 %201
    %205 = vset.pattern.permute.xlu0 0
    %206 = vperm.xlu0 %205, %v172
    %v207 = vpop.permute.xlu0 %206
    %210 = vset.pattern.permute.xlu0 0
    %211 = vperm.xlu0 %210, %v173
    %v212 = vpop.permute.xlu0 %211
    %215 = vset.pattern.permute.xlu0 0
    %216 = vperm.xlu0 %215, %v174
    %v217 = vpop.permute.xlu0 %216
    %220 = vset.pattern.permute.xlu0 0
    %221 = vperm.xlu0 %220, %v175
    %v222 = vpop.permute.xlu0 %221
    %225 = vset.pattern.permute.xlu0 0
    %226 = vperm.xlu0 %225, %v176
    %v227 = vpop.permute.xlu0 %226
    %230 = vset.pattern.permute.xlu0 0
    %231 = vperm.xlu0 %230, %v177
    %v232 = vpop.permute.xlu0 %231
    %235 = vset.pattern.permute.xlu0 0
    %236 = vperm.xlu0 %235, %v178
    %v237 = vpop.permute.xlu0 %236
    %240 = vset.pattern.permute.xlu0 0
    %241 = vperm.xlu0 %240, %v179
    %v242 = vpop.permute.xlu0 %241
    %245 = vset.pattern.permute.xlu0 0
    %246 = vperm.xlu0 %245, %v180
    %v247 = vpop.permute.xlu0 %246
    %250 = vset.pattern.permute.xlu0 0
    %251 = vperm.xlu0 %250, %v181
    %v252 = vpop.permute.xlu0 %251
    %255 = vset.pattern.permute.xlu0 0
    %256 = vperm.xlu0 %255, %v182
    %v257 = vpop.permute.xlu0 %256
    %260 = vset.pattern.permute.xlu0 0
    %261 = vperm.xlu0 %260, %v183
    %v262 = vpop.permute.xlu0 %261
    %v264 = vmul.f32 %v106, %v187
    %v265 = vmul.f32 %v109, %v192
    %v266 = vmul.f32 %v114, %v197
    %v267 = vmul.f32 %v117, %v202
    %v268 = vmul.f32 %v122, %v207
    %v269 = vmul.f32 %v125, %v212
    %v270 = vmul.f32 %v130, %v217
    %v271 = vmul.f32 %v133, %v222
    %v272 = vmul.f32 %v138, %v227
    %v273 = vmul.f32 %v141, %v232
    %v274 = vmul.f32 %v146, %v237
    %v275 = vmul.f32 %v149, %v242
    %v276 = vmul.f32 %v154, %v247
    %v277 = vmul.f32 %v157, %v252
    %v278 = vmul.f32 %v162, %v257
    %v279 = vmul.f32 %v165, %v262
    %v280 = vpack.c.bf16 %v265, %v264
    %v281 = vpack.c.bf16 %v267, %v266
    %v282 = vpack.c.bf16 %v269, %v268
    %v283 = vpack.c.bf16 %v271, %v270
    %v284 = vpack.c.bf16 %v273, %v272
    %v285 = vpack.c.bf16 %v275, %v274
    %v286 = vpack.c.bf16 %v277, %v276
    %v287 = vpack.c.bf16 %v279, %v278
    %v296 = vunpack.c.l.b16 %v280
    %v297 = vunpack.c.h.b16 %v280
    %v298 = vunpack.c.l.b16 %v281
    %v299 = vunpack.c.h.b16 %v281
    %v300 = vunpack.c.l.b16 %v282
    %v301 = vunpack.c.h.b16 %v282
    %v302 = vunpack.c.l.b16 %v283
    %v303 = vunpack.c.h.b16 %v283
    %v304 = vunpack.c.l.b16 %v284
    %v305 = vunpack.c.h.b16 %v284
    %v306 = vunpack.c.l.b16 %v285
    %v307 = vunpack.c.h.b16 %v285
    %v308 = vunpack.c.l.b16 %v286
    %v309 = vunpack.c.h.b16 %v286
    %v310 = vunpack.c.l.b16 %v287
    %v311 = vunpack.c.h.b16 %v287
    %v312 = vpack.c.b16 %v296, %v296
    %v313 = vpack.c.b16 %v297, %v297
    %v314 = vpack.c.b16 %v298, %v298
    %v315 = vpack.c.b16 %v299, %v299
    %v316 = vpack.c.b16 %v300, %v300
    %v317 = vpack.c.b16 %v301, %v301
    %v318 = vpack.c.b16 %v302, %v302
    %v319 = vpack.c.b16 %v303, %v303
    %v320 = vpack.c.b16 %v304, %v304
    %v321 = vpack.c.b16 %v305, %v305
    %v322 = vpack.c.b16 %v306, %v306
    %v323 = vpack.c.b16 %v307, %v307
    %v324 = vpack.c.b16 %v308, %v308
    %v325 = vpack.c.b16 %v309, %v309
    %v326 = vpack.c.b16 %v310, %v310
    %v327 = vpack.c.b16 %v311, %v311
    %344 = vst [vmem:[#allocation2] sm:$0xf] %v312
    %345 = vst [vmem:[#allocation2 + $0x4] sm:$0xf] %v313
    %346 = vst [vmem:[#allocation2 + $0x8] sm:$0xf] %v314
    %347 = vst [vmem:[#allocation2 + $0xc] sm:$0xf] %v315
    %348 = vst [vmem:[#allocation2 + $0x10] sm:$0xf] %v316
    %349 = vst [vmem:[#allocation2 + $0x14] sm:$0xf] %v317
    %350 = vst [vmem:[#allocation2 + $0x18] sm:$0xf] %v318
    %351 = vst [vmem:[#allocation2 + $0x1c] sm:$0xf] %v319
    %352 = vst [vmem:[#allocation2 + $0x20] sm:$0xf] %v320
    %353 = vst [vmem:[#allocation2 + $0x24] sm:$0xf] %v321
    %354 = vst [vmem:[#allocation2 + $0x28] sm:$0xf] %v322
    %355 = vst [vmem:[#allocation2 + $0x2c] sm:$0xf] %v323
    %356 = vst [vmem:[#allocation2 + $0x30] sm:$0xf] %v324
    %357 = vst [vmem:[#allocation2 + $0x34] sm:$0xf] %v325
    %358 = vst [vmem:[#allocation2 + $0x38] sm:$0xf] %v326
    %359 = vst [vmem:[#allocation2 + $0x3c] sm:$0xf] %v327
    // Predicated region
    $region14: #{tpu_custom_call.1} parent=1 // pred_check
      _
    $region15: #{tpu_custom_call.1} parent=1 // pred_check_branch
      %361 = sbr.rel (0) target = $region17
    $region16: #{tpu_custom_call.1} parent=1 // pred_region
      %s363 = ssub.s32 1024, 1024
      %364 = vsyncadd [#allocation3], %s363
      %s365 = sshll.u32 [#allocation2], 4
      %s366 = int_to_ptr.vmem [resolvable:$true] %s365
      %371 = dma.vmem_to_hbm [thread:$0]  %s366, 1024, %s3, [#allocation3], 64, 64, 4
    $region17: #{tpu_custom_call.1} parent=1 // pred_fallthru
      _
    // Predicated region
    $region18: #{tpu_custom_call.1} parent=1 // pred_check
      _
    $region19: #{tpu_custom_call.1} parent=1 // pred_check_branch
      %373 = sbr.rel (0) target = $region21
    $region20: #{tpu_custom_call.1} parent=1 // pred_region
      %374 = dma.done [#allocation3], 1024
    $region21: #{tpu_custom_call.1} parent=1 // pred_fallthru
      _
    %375 = vsyncpa [#allocation3], 1

</llo_original>
